<compile_context>
chip_gen: v7x
topology: tpu7x:2x2x1
jax: 0.10.0
libtpu: 0.0.40
codegen_flags: <defaults>
</compile_context>

<pallas_src>
import functools

import jax
import jax.numpy as jnp
from jax.experimental import pallas as pl
from jax.experimental.pallas import tpu as pltpu


def _linear_kernel(xt_ref, w_ref, b_ref, ot_ref):
    # xt_ref: (K, TN)   input, batch along lanes
    # w_ref : (F, K)    PyTorch-layout weight (out_features, in_features)
    # b_ref : (F, 1)    bias as a column -> broadcasts along lanes for free
    # ot_ref: (F, TN)   output, batch along lanes (lane-dense stores)
    xt = xt_ref[...]
    w = w_ref[...]
    b = b_ref[...]

    k_dim = w.shape[1]  # static (== 3)
    # Unrolled contraction on the VPU: (F,1) * (1,TN) broadcast-FMAs.
    acc = w[:, 0:1] * xt[0:1, :]
    for k in range(1, k_dim):
        acc = acc + w[:, k : k + 1] * xt[k : k + 1, :]

    ot_ref[...] = (acc + b).astype(ot_ref.dtype)


def _round_up(v, m):
    return ((v + m - 1) // m) * m


@functools.partial(jax.jit, static_argnames=("tile_cap",))
def linear_in_linear(x, w, b, *, tile_cap=32768):
    """Computes x @ w.T + b (torch.nn.Linear semantics) with a Pallas kernel.

    x: (N, in_features)              float32
    w: (out_features, in_features)   float32  (PyTorch weight layout)
    b: (out_features,)               float32
    """
    n, in_features = x.shape
    out_features = w.shape[0]

    # Lane-dense layout: batch goes along the lane (last) dimension.  Under jit
    # this transpose fuses with the surrounding graph instead of being a
    # standalone dispatch.
    # TODO(synk): negotiate a (K, N) input / (F, N) output layout with the
    # caller to eliminate the boundary transposes entirely.
    xt = x.T                                  # (in_features, N)
    b2d = b.reshape(out_features, 1)          # (out_features, 1)

    # Lane tile: multiple of 128, capped at tile_cap, and sized so the grid has
    # >= 2 steps when N allows (v7x megacore sharding of the "parallel" axis).
    tn = max(128, min(tile_cap, _round_up(pl.cdiv(n, 2), 128)))
    grid = (pl.cdiv(n, tn),)

    # Bandwidth-bound op: ~32 B/row of ideal traffic, 30 FLOP/row.
    cost = pl.CostEstimate(
        flops=2 * n * in_features * out_features,
        transcendentals=0,
        bytes_accessed=4 * (n * in_features + n * out_features
                            + out_features * in_features + out_features),
    )

    ot = pl.pallas_call(
        _linear_kernel,
        out_shape=jax.ShapeDtypeStruct((out_features, n), x.dtype),
        grid=grid,
        in_specs=[
            pl.BlockSpec((in_features, tn), lambda i: (0, i)),
            pl.BlockSpec((out_features, in_features), lambda i: (0, 0)),
            pl.BlockSpec((out_features, 1), lambda i: (0, 0)),
        ],
        out_specs=pl.BlockSpec((out_features, tn), lambda i: (0, i)),
        compiler_params=pltpu.CompilerParams(
            dimension_semantics=("parallel",),
        ),
        cost_estimate=cost,
    )(xt, w, b2d)

    # Back to PyTorch output layout (N, out_features); fuses under jit.
    return ot.T


if __name__ == "__main__":
    key = jax.random.PRNGKey(0)
    k_x, k_w, k_b, k_x2, k_x3 = jax.random.split(key, 5)

    in_features, out_features = 3, 5
    batch = 8

    # Deterministic parameter init (mimics nn.Linear's uniform(-1/sqrt(fan_in), ...)).
    bound = 1.0 / jnp.sqrt(jnp.float32(in_features))
    w = jax.random.uniform(k_w, (out_features, in_features), jnp.float32,
                           minval=-bound, maxval=bound)   # PyTorch layout (out, in)
    b = jax.random.uniform(k_b, (out_features,), jnp.float32,
                           minval=-bound, maxval=bound)

    # Small demo batch (single ragged grid step, no padding copy).
    x = jax.random.normal(k_x, (batch, in_features), jnp.float32)
    out = jax.block_until_ready(linear_in_linear(x, w, b))
    ref = x @ w.T + b
    assert out.shape == (batch, out_features)
    assert jnp.allclose(out, ref, atol=1e-5, rtol=1e-5)

    # Larger batch: multi-step grid with a ragged trailing block.
    x2 = jax.random.normal(k_x2, (1000, in_features), jnp.float32)
    out2 = jax.block_until_ready(linear_in_linear(x2, w, b))
    ref2 = x2 @ w.T + b
    assert out2.shape == (1000, out_features)
    assert jnp.allclose(out2, ref2, atol=1e-5, rtol=1e-5)

    # Larger still: exercises the 32K-lane tile cap and a partial final block.
    x3 = jax.random.normal(k_x3, (70001, in_features), jnp.float32)
    out3 = jax.block_until_ready(linear_in_linear(x3, w, b))
    ref3 = x3 @ w.T + b
    assert out3.shape == (70001, out_features)
    assert jnp.allclose(out3, ref3, atol=1e-5, rtol=1e-5)

    print("KERNEL_OK")
</pallas_src>

<mosaic_0001>
module attributes {stable_mosaic.version = 11 : i64} {
  func.func @_linear_kernel(%arg0: i32, %arg1: memref<3x128xf32, #tpu.memory_space<vmem>>, %arg2: memref<5x3xf32, #tpu.memory_space<vmem>>, %arg3: memref<5x1xf32, #tpu.memory_space<vmem>>, %arg4: memref<5x128xf32, #tpu.memory_space<vmem>>) attributes {dimension_semantics = [#tpu.dimension_semantics<parallel>], iteration_bounds = array<i64: 1>, scalar_prefetch = 0 : i64, scratch_operands = 0 : i64, tpu.core_type = #tpu.core_type<tc>, window_params = [{transform_indices = @transform_0, window_bounds = array<i64: 3, 128>}, {pipeline_mode = #tpu.pipeline_mode<synchronous>, transform_indices = @transform_1, window_bounds = array<i64: 5, 3>}, {pipeline_mode = #tpu.pipeline_mode<synchronous>, transform_indices = @transform_2, window_bounds = array<i64: 5, 1>}, {transform_indices = @transform_3, window_bounds = array<i64: 5, 128>}]} {
    %c0 = arith.constant 0 : index
    %c0_0 = arith.constant 0 : index
    %0 = vector.load %arg1[%c0, %c0_0] : memref<3x128xf32, #tpu.memory_space<vmem>>, vector<3x128xf32>
    %c0_1 = arith.constant 0 : index
    %c0_2 = arith.constant 0 : index
    %1 = vector.load %arg2[%c0_1, %c0_2] : memref<5x3xf32, #tpu.memory_space<vmem>>, vector<5x3xf32>
    %c0_3 = arith.constant 0 : index
    %c0_4 = arith.constant 0 : index
    %2 = vector.load %arg3[%c0_3, %c0_4] : memref<5x1xf32, #tpu.memory_space<vmem>>, vector<5x1xf32>
    %3 = vector.extract_strided_slice %1 {offsets = [0, 0], sizes = [5, 1], strides = [1, 1]} : vector<5x3xf32> to vector<5x1xf32>
    %4 = vector.extract_strided_slice %0 {offsets = [0, 0], sizes = [1, 128], strides = [1, 1]} : vector<3x128xf32> to vector<1x128xf32>
    %5 = vector.broadcast %3 : vector<5x1xf32> to vector<5x128xf32>
    %6 = vector.broadcast %4 : vector<1x128xf32> to vector<5x128xf32>
    %7 = arith.mulf %5, %6 : vector<5x128xf32>
    %8 = vector.extract_strided_slice %1 {offsets = [0, 1], sizes = [5, 1], strides = [1, 1]} : vector<5x3xf32> to vector<5x1xf32>
    %9 = vector.extract_strided_slice %0 {offsets = [1, 0], sizes = [1, 128], strides = [1, 1]} : vector<3x128xf32> to vector<1x128xf32>
    %10 = vector.broadcast %8 : vector<5x1xf32> to vector<5x128xf32>
    %11 = vector.broadcast %9 : vector<1x128xf32> to vector<5x128xf32>
    %12 = arith.mulf %10, %11 : vector<5x128xf32>
    %13 = arith.addf %7, %12 : vector<5x128xf32>
    %14 = vector.extract_strided_slice %1 {offsets = [0, 2], sizes = [5, 1], strides = [1, 1]} : vector<5x3xf32> to vector<5x1xf32>
    %15 = vector.extract_strided_slice %0 {offsets = [2, 0], sizes = [1, 128], strides = [1, 1]} : vector<3x128xf32> to vector<1x128xf32>
    %16 = vector.broadcast %14 : vector<5x1xf32> to vector<5x128xf32>
    %17 = vector.broadcast %15 : vector<1x128xf32> to vector<5x128xf32>
    %18 = arith.mulf %16, %17 : vector<5x128xf32>
    %19 = arith.addf %13, %18 : vector<5x128xf32>
    %20 = vector.broadcast %2 : vector<5x1xf32> to vector<5x128xf32>
    %21 = arith.addf %19, %20 : vector<5x128xf32>
    %c0_5 = arith.constant 0 : index
    %c0_6 = arith.constant 0 : index
    %22 = vector.load %arg4[%c0_5, %c0_6] : memref<5x128xf32, #tpu.memory_space<vmem>>, vector<5x128xf32>
    tpu.vector_store %arg4[%c0_5, %c0_6], %21 {strides = array<i32>} : memref<5x128xf32, #tpu.memory_space<vmem>>, vector<5x128xf32>,
    return
  }
  func.func @transform_0(%arg0: i32) -> (i32, i32) {
    %c0_i32 = arith.constant 0 : i32
    %c0_i32_0 = arith.constant 0 : i32
    return %c0_i32, %arg0 : i32, i32
  }
  func.func @transform_1(%arg0: i32) -> (i32, i32) {
    %c0_i32 = arith.constant 0 : i32
    %c0_i32_0 = arith.constant 0 : i32
    %c0_i32_1 = arith.constant 0 : i32
    return %c0_i32, %c0_i32_0 : i32, i32
  }
  func.func @transform_2(%arg0: i32) -> (i32, i32) {
    %c0_i32 = arith.constant 0 : i32
    %c0_i32_0 = arith.constant 0 : i32
    %c0_i32_1 = arith.constant 0 : i32
    return %c0_i32, %c0_i32_0 : i32, i32
  }
  func.func @transform_3(%arg0: i32) -> (i32, i32) {
    %c0_i32 = arith.constant 0 : i32
    %c0_i32_0 = arith.constant 0 : i32
    return %c0_i32, %arg0 : i32, i32
  }
}

</mosaic_0001>

<llo_original>
// kernel: linear_in_linear.1
$region0: #{linear_in_linear.1}
  #allocation0 [shape = 'u32[]', space=smem, size = 0x4, offset = 0x4, fixed_abs, tag = 'smem constant byte address 0x4 - core index']
  #allocation1 [shape = 'u32[144,128]{1,0:T(1,128)}', space=vmem, size = 0x12000, scoped, tag = 'internal scratch']
  %s0 = inlined_call_operand.vmem [shape: f32[3,8], index: 0, kind: input, shape index: {}]
  %s1 = inlined_call_operand.vmem [shape: f32[5,3], index: 1, kind: input, shape index: {}]
  %s2 = inlined_call_operand.vmem [shape: f32[5,1], index: 2, kind: input, shape index: {}]
  %s3 = inlined_call_operand.vmem [shape: f32[5,8], index: 3, kind: output, shape index: {}]
  %s4 = sld [smem:[#allocation0]]
  $region22: #{linear_in_linear.1} parent=0
    _
  %s6 = ssub.s32 1, %s4
  %s7 = scalar_select 0, %s6, %s4
  // Predicated region
  $region2: #{linear_in_linear.1} parent=0 // pred_check
    _
  $region3: #{linear_in_linear.1} parent=0 // pred_check_branch
    %9 = sbr.rel (0) target = $region5
  $region4: #{linear_in_linear.1} parent=0 // pred_region
    _
  $region5: #{linear_in_linear.1} parent=0 // pred_fallthru
    _
  // Predicated region
  $region6: #{linear_in_linear.1} parent=0 // pred_check
    _
  $region7: #{linear_in_linear.1} parent=0 // pred_check_branch
    %11 = sbr.rel (0) target = $region9
  $region8: #{linear_in_linear.1} parent=0 // pred_region
    _
  $region9: #{linear_in_linear.1} parent=0 // pred_fallthru
    _
  // Predicated region
  $region10: #{linear_in_linear.1} parent=0 // pred_check
    _
  $region11: #{linear_in_linear.1} parent=0 // pred_check_branch
    %13 = sbr.rel (0) target = $region13
  $region12: #{linear_in_linear.1} parent=0 // pred_region
    _
  $region13: #{linear_in_linear.1} parent=0 // pred_fallthru
    _
  %v14 = vld [vmem:[%s0] sm:$0x7]
  %v15 = vld [vmem:[%s1] sm:$0x1f]
  %v16 = vld [vmem:[%s2] sm:$0x1f]
  %18 = vset.pattern.permute.xlu0 0
  %19 = vperm.xlu0 %18, %v15
  %v20 = vpop.permute.xlu0 %19
  %v22 = vlaneseq
  %v23 = vshrl.u32 %v22, 7
  %v24 = vsub.s32 0, %v23
  %v25 = vrot.slane %v14, %v24
  %v26 = vmul.f32 %v20, %v25
  %27 = vset.pattern.permute.xlu0 1
  %28 = vperm.xlu0 %27, %v15
  %v29 = vpop.permute.xlu0 %28
  %v31 = vlaneseq
  %v32 = vshrl.u32 %v31, 7
  %v33 = vsub.s32 1, %v32
  %v34 = vrot.slane %v14, %v33
  %v35 = vmul.f32 %v29, %v34
  %v36 = vadd.f32 %v26, %v35
  %37 = vset.pattern.permute.xlu0 2
  %38 = vperm.xlu0 %37, %v15
  %v39 = vpop.permute.xlu0 %38
  %v41 = vlaneseq
  %v42 = vshrl.u32 %v41, 7
  %v43 = vsub.s32 2, %v42
  %v44 = vrot.slane %v14, %v43
  %v45 = vmul.f32 %v39, %v44
  %v46 = vadd.f32 %v36, %v45
  %48 = vset.pattern.permute.xlu0 0
  %49 = vperm.xlu0 %48, %v16
  %v50 = vpop.permute.xlu0 %49
  %v52 = vadd.f32 %v46, %v50
  %53 = vst [vmem:[%s3] sm:$0x1f] %v52
  // Predicated region
  $region14: #{linear_in_linear.1} parent=0 // pred_check
    _
  $region15: #{linear_in_linear.1} parent=0 // pred_check_branch
    %55 = sbr.rel (0) target = $region17
  $region16: #{linear_in_linear.1} parent=0 // pred_region
    _
  $region17: #{linear_in_linear.1} parent=0 // pred_fallthru
    _
  // Predicated region
  $region18: #{linear_in_linear.1} parent=0 // pred_check
    _
  $region19: #{linear_in_linear.1} parent=0 // pred_check_branch
    %57 = sbr.rel (0) target = $region21
  $region20: #{linear_in_linear.1} parent=0 // pred_region
    _
  $region21: #{linear_in_linear.1} parent=0 // pred_fallthru
    _

</llo_original>
